<compile_context>
chip_gen: v7x
topology: tpu7x:2x2x1
jax: 0.10.0
libtpu: 0.0.40
codegen_flags: <defaults>
</compile_context>

<pallas_src>
import functools

import jax
import jax.numpy as jnp
import numpy as np
from jax.experimental import pallas as pl
from jax.experimental.pallas import tpu as pltpu


def cds_kernel(
    # activations
    ph_ref, pc_ref, cand_ref,
    # fused weights / biases
    wph_ref, bph_ref, wpc_ref, bpc_ref, wcand_ref, bcand_ref,
    # single packed output slab
    out_ref,
    *, seg,
):
    n_intent, n_nextstep, n_action, n_value, proj, n_copy = seg

    ph = ph_ref[...]          # [B, H]  pooled_history
    pc = pc_ref[...]          # [B, H]  pooled_context

    def softmax(x):           # softmax over last axis (== torch dim=1 for 2-D)
        m = jnp.max(x, axis=-1, keepdims=True)
        e = jnp.exp(x - m)
        inv = pl.reciprocal(jnp.sum(e, axis=-1, keepdims=True), approx=False)
        return e * inv

    # ---- pooled_history side: one fused matmul for all five heads ----------
    # segments: [intent | nextstep | action | enum | context_proj(128)]
    ph_out = jnp.dot(ph, wph_ref[...], preferred_element_type=jnp.float32) + bph_ref[...]
    o1 = n_intent
    o2 = o1 + n_nextstep
    o3 = o2 + n_action
    o4 = o3 + n_value
    intent    = softmax(ph_out[:, :o1])
    nextstep  = softmax(ph_out[:, o1:o2])
    action    = softmax(ph_out[:, o2:o3])
    enum_prob = softmax(ph_out[:, o3:o4])
    proj_hist = ph_out[:, o4:o4 + proj]                          # [B, 128]

    # ---- utterance ranking: single batched candidate projection ------------
    B, C, H = cand_ref.shape
    cand_flat = cand_ref[...].reshape(B * C, H)                  # free leading-dim collapse
    cand_proj = (jnp.dot(cand_flat, wcand_ref[...],
                         preferred_element_type=jnp.float32)
                 + bcand_ref[...]).reshape(B, C, proj)           # [B, C, 128]
    utt_logits = jnp.sum(cand_proj * proj_hist[:, None, :], axis=-1)   # [B, C]
    utt = softmax(utt_logits)

    # ---- pooled_context side: copy logits + folded gate column -------------
    # segments: [copy(100) | gate(1)]; gate column weight already folds the
    # bias-free copy_context path exactly (done host-side).
    pc_out = jnp.dot(pc, wpc_ref[...], preferred_element_type=jnp.float32) + bpc_ref[...]
    copy_prob = softmax(pc_out[:, :n_copy])
    gate = 1.0 / (1.0 + jnp.exp(-pc_out[:, n_copy:n_copy + 1]))  # [B, 1] sigmoid

    # ---- one lane-dense packed store ----------------------------------------
    out_ref[...] = jnp.concatenate(
        [intent, nextstep, action, utt, gate * enum_prob, (1.0 - gate) * copy_prob],
        axis=-1)


def prepare_cds_params(params):
    """One-time (cacheable) host-side fusion of the per-head Linear weights."""
    f32 = jnp.float32
    A = lambda k: jnp.asarray(params[k], f32)

    Wi, bi = A('intent_w'),    A('intent_b')
    Wn, bn = A('nextstep_w'),  A('nextstep_b')
    Wa, ba = A('action_w'),    A('action_b')
    We, be = A('enum_w'),      A('enum_b')
    Wc, bc = A('context_w'),   A('context_b')      # [128, H]
    Wk, bk = A('candidate_w'), A('candidate_b')    # [128, H]
    Wp, bp = A('copy_w'),      A('copy_b')         # [100, H]
    Wg, bg = A('gating_w'),    A('gating_b')       # [1, H+100], [1]
    H = Wi.shape[1]

    # pooled_history side: [H, n_intent+n_nextstep+n_action+n_value+128]
    W_ph = jnp.concatenate([Wi.T, Wn.T, Wa.T, We.T, Wc.T], axis=1)
    b_ph = jnp.concatenate([bi, bn, ba, be, bc])[None, :]

    # pooled_context side: gate folded into one extra column.
    # gate_logit = pc . wgc + (pc @ Wcopy^T) . wgp + bg  ==  pc @ (wgc + wgp @ Wcopy)^T + bg
    w_gate_eff = Wg[:, :H] + Wg[:, H:] @ Wp                      # [1, H]
    W_pc = jnp.concatenate([Wp.T, w_gate_eff.T], axis=1)         # [H, 101]
    b_pc = jnp.concatenate([bp, bg])[None, :]                    # [1, 101]

    seg = (int(Wi.shape[0]), int(Wn.shape[0]), int(Wa.shape[0]),
           int(We.shape[0]), int(Wk.shape[0]), int(Wp.shape[0]))
    return dict(W_ph=W_ph, b_ph=b_ph, W_pc=W_pc, b_pc=b_pc,
                W_cand=Wk.T, b_cand=bk[None, :], seg=seg)


def cascade_dialog_success(pooled_history, pooled_context, candidates, fused):
    """Returns (intent, nextstep, action, value, utt) scores (CDSModelOutput order)."""
    f32 = jnp.float32
    B, _ = pooled_history.shape
    C = candidates.shape[1]
    n_intent, n_nextstep, n_action, n_value, _proj, n_copy = fused['seg']
    total = n_intent + n_nextstep + n_action + C + n_value + n_copy

    vmem = pl.BlockSpec(memory_space=pltpu.MemorySpace.VMEM)
    slab = pl.pallas_call(
        functools.partial(cds_kernel, seg=fused['seg']),
        out_shape=jax.ShapeDtypeStruct((B, total), f32),
        in_specs=[vmem] * 9,
        out_specs=vmem,
    )(jnp.asarray(pooled_history, f32),
      jnp.asarray(pooled_context, f32),
      jnp.asarray(candidates, f32),
      fused['W_ph'], fused['b_ph'],
      fused['W_pc'], fused['b_pc'],
      fused['W_cand'], fused['b_cand'])

    # slice the packed slab back apart (value = enum|copy is one contiguous slice)
    o1 = n_intent
    o2 = o1 + n_nextstep
    o3 = o2 + n_action
    o4 = o3 + C
    intent   = slab[:, :o1]
    nextstep = slab[:, o1:o2]
    action   = slab[:, o2:o3]
    utt      = slab[:, o3:o4]
    value    = slab[:, o4:]
    return intent, nextstep, action, value, utt


if __name__ == "__main__":
    key = jax.random.PRNGKey(0)
    B, H, C = 2, 32, 8
    n_intent, n_nextstep, n_action, n_value, n_copy, proj = 8, 3, 16, 8, 100, 128
    num_utts = 20

    keys = iter(jax.random.split(key, 32))

    def linear_params(out_dim, in_dim):
        bound = 1.0 / np.sqrt(in_dim)
        w = jax.random.uniform(next(keys), (out_dim, in_dim), jnp.float32, -bound, bound)
        b = jax.random.uniform(next(keys), (out_dim,), jnp.float32, -bound, bound)
        return w, b

    params = {}
    for name, out_dim, in_dim in [
        ('intent', n_intent, H), ('nextstep', n_nextstep, H), ('action', n_action, H),
        ('candidate', proj, H), ('context', proj, H), ('enum', n_value, H),
        ('copy', n_copy, H), ('gating', 1, H + n_copy),
    ]:
        w, b = linear_params(out_dim, in_dim)
        params[f'{name}_w'], params[f'{name}_b'] = w, b

    pooled_history = jax.random.normal(next(keys), (B, H), jnp.float32)
    pooled_context = jax.random.normal(next(keys), (B, H), jnp.float32)
    utt_vectors    = jax.random.normal(next(keys), (num_utts, H), jnp.float32)
    all_candidates = jax.random.randint(next(keys), (B, C), 0, num_utts)
    # glue for add_candidate_data + per-row stacking of utt_vectors
    candidates = jnp.take(utt_vectors, all_candidates, axis=0)            # [B, C, H]

    fused = prepare_cds_params(params)   # one-time weight fusion (cache across calls)
    outs = jax.block_until_ready(
        cascade_dialog_success(pooled_history, pooled_context, candidates, fused))

    # pure-JAX reference (mirrors the PyTorch forward exactly)
    def ref_forward():
        lin = lambda x, w, b: x @ w.T + b
        sm = lambda x: jax.nn.softmax(x, axis=1)
        intent   = sm(lin(pooled_history, params['intent_w'], params['intent_b']))
        nextstep = sm(lin(pooled_history, params['nextstep_w'], params['nextstep_b']))
        action   = sm(lin(pooled_history, params['action_w'], params['action_b']))
        enum_p   = sm(lin(pooled_history, params['enum_w'], params['enum_b']))
        proj_hist = lin(pooled_history, params['context_w'], params['context_b'])[:, None, :]
        cand_p = jnp.einsum('bch,oh->bco', candidates, params['candidate_w']) + params['candidate_b']
        utt = sm(jnp.einsum('bqo,bco->bc', proj_hist, cand_p))
        copy_ctx = pooled_context @ params['copy_w'].T
        copy_p = sm(copy_ctx + params['copy_b'])
        joined = jnp.concatenate([pooled_context, copy_ctx], axis=1)
        gate = jax.nn.sigmoid(joined @ params['gating_w'].T + params['gating_b'])
        value = jnp.concatenate([gate * enum_p, (1 - gate) * copy_p], axis=1)
        return intent, nextstep, action, value, utt

    for got, want in zip(outs, ref_forward()):
        np.testing.assert_allclose(np.asarray(got), np.asarray(want), rtol=1e-4, atol=1e-4)

    print("KERNEL_OK")
</pallas_src>

<mosaic_0001>
module attributes {stable_mosaic.version = 11 : i64} {
  func.func @cds_kernel(%arg0: memref<2x32xf32, #tpu.memory_space<vmem>>, %arg1: memref<2x32xf32, #tpu.memory_space<vmem>>, %arg2: memref<2x8x32xf32, #tpu.memory_space<vmem>>, %arg3: memref<32x163xf32, #tpu.memory_space<vmem>>, %arg4: memref<1x163xf32, #tpu.memory_space<vmem>>, %arg5: memref<32x101xf32, #tpu.memory_space<vmem>>, %arg6: memref<1x101xf32, #tpu.memory_space<vmem>>, %arg7: memref<32x128xf32, #tpu.memory_space<vmem>>, %arg8: memref<1x128xf32, #tpu.memory_space<vmem>>, %arg9: memref<2x143xf32, #tpu.memory_space<vmem>>) attributes {dimension_semantics = [], scalar_prefetch = 0 : i64, scratch_operands = 0 : i64, tpu.core_type = #tpu.core_type<tc>} {
    %c0 = arith.constant 0 : index
    %c0_0 = arith.constant 0 : index
    %0 = vector.load %arg0[%c0, %c0_0] : memref<2x32xf32, #tpu.memory_space<vmem>>, vector<2x32xf32>
    %c0_1 = arith.constant 0 : index
    %c0_2 = arith.constant 0 : index
    %1 = vector.load %arg1[%c0_1, %c0_2] : memref<2x32xf32, #tpu.memory_space<vmem>>, vector<2x32xf32>
    %c0_3 = arith.constant 0 : index
    %c0_4 = arith.constant 0 : index
    %2 = vector.load %arg3[%c0_3, %c0_4] : memref<32x163xf32, #tpu.memory_space<vmem>>, vector<32x163xf32>
    %cst = arith.constant dense<0.000000e+00> : vector<2x163xf32>
    %3 = tpu.matmul %0, %2, %cst {dimension_numbers = #tpu.dot_dimension_numbers<[1], [0], [0], [1], [0, 0, 1, 1], [], []>} : vector<2x32xf32>, vector<32x163xf32>, vector<2x163xf32> -> vector<2x163xf32>
    %c0_5 = arith.constant 0 : index
    %c0_6 = arith.constant 0 : index
    %4 = vector.load %arg4[%c0_5, %c0_6] : memref<1x163xf32, #tpu.memory_space<vmem>>, vector<1x163xf32>
    %5 = vector.broadcast %4 : vector<1x163xf32> to vector<2x163xf32>
    %6 = arith.addf %3, %5 : vector<2x163xf32>
    %7 = vector.extract_strided_slice %6 {offsets = [0, 0], sizes = [2, 8], strides = [1, 1]} : vector<2x163xf32> to vector<2x8xf32>
    %cst_7 = arith.constant dense<0xFF800000> : vector<2xf32>
    %8 = vector.multi_reduction <maximumf>, %7, %cst_7 [1] : vector<2x8xf32> to vector<2xf32>
    %9 = vector.shape_cast %8 : vector<2xf32> to vector<2x1xf32>
    %10 = vector.broadcast %9 : vector<2x1xf32> to vector<2x8xf32>
    %11 = arith.subf %7, %10 : vector<2x8xf32>
    %12 = math.exp %11 : vector<2x8xf32>
    %cst_8 = arith.constant dense<0.000000e+00> : vector<2xf32>
    %13 = vector.multi_reduction <add>, %12, %cst_8 [1] : vector<2x8xf32> to vector<2xf32>
    %14 = vector.shape_cast %13 : vector<2xf32> to vector<2x1xf32>
    %15 = tpu.reciprocal %14 : vector<2x1xf32> -> vector<2x1xf32>
    %16 = vector.broadcast %15 : vector<2x1xf32> to vector<2x8xf32>
    %17 = arith.mulf %12, %16 : vector<2x8xf32>
    %18 = vector.extract_strided_slice %6 {offsets = [0, 8], sizes = [2, 3], strides = [1, 1]} : vector<2x163xf32> to vector<2x3xf32>
    %cst_9 = arith.constant dense<0xFF800000> : vector<2xf32>
    %19 = vector.multi_reduction <maximumf>, %18, %cst_9 [1] : vector<2x3xf32> to vector<2xf32>
    %20 = vector.shape_cast %19 : vector<2xf32> to vector<2x1xf32>
    %21 = vector.broadcast %20 : vector<2x1xf32> to vector<2x3xf32>
    %22 = arith.subf %18, %21 : vector<2x3xf32>
    %23 = math.exp %22 : vector<2x3xf32>
    %cst_10 = arith.constant dense<0.000000e+00> : vector<2xf32>
    %24 = vector.multi_reduction <add>, %23, %cst_10 [1] : vector<2x3xf32> to vector<2xf32>
    %25 = vector.shape_cast %24 : vector<2xf32> to vector<2x1xf32>
    %26 = tpu.reciprocal %25 : vector<2x1xf32> -> vector<2x1xf32>
    %27 = vector.broadcast %26 : vector<2x1xf32> to vector<2x3xf32>
    %28 = arith.mulf %23, %27 : vector<2x3xf32>
    %29 = vector.extract_strided_slice %6 {offsets = [0, 11], sizes = [2, 16], strides = [1, 1]} : vector<2x163xf32> to vector<2x16xf32>
    %cst_11 = arith.constant dense<0xFF800000> : vector<2xf32>
    %30 = vector.multi_reduction <maximumf>, %29, %cst_11 [1] : vector<2x16xf32> to vector<2xf32>
    %31 = vector.shape_cast %30 : vector<2xf32> to vector<2x1xf32>
    %32 = vector.broadcast %31 : vector<2x1xf32> to vector<2x16xf32>
    %33 = arith.subf %29, %32 : vector<2x16xf32>
    %34 = math.exp %33 : vector<2x16xf32>
    %cst_12 = arith.constant dense<0.000000e+00> : vector<2xf32>
    %35 = vector.multi_reduction <add>, %34, %cst_12 [1] : vector<2x16xf32> to vector<2xf32>
    %36 = vector.shape_cast %35 : vector<2xf32> to vector<2x1xf32>
    %37 = tpu.reciprocal %36 : vector<2x1xf32> -> vector<2x1xf32>
    %38 = vector.broadcast %37 : vector<2x1xf32> to vector<2x16xf32>
    %39 = arith.mulf %34, %38 : vector<2x16xf32>
    %40 = vector.extract_strided_slice %6 {offsets = [0, 27], sizes = [2, 8], strides = [1, 1]} : vector<2x163xf32> to vector<2x8xf32>
    %cst_13 = arith.constant dense<0xFF800000> : vector<2xf32>
    %41 = vector.multi_reduction <maximumf>, %40, %cst_13 [1] : vector<2x8xf32> to vector<2xf32>
    %42 = vector.shape_cast %41 : vector<2xf32> to vector<2x1xf32>
    %43 = vector.broadcast %42 : vector<2x1xf32> to vector<2x8xf32>
    %44 = arith.subf %40, %43 : vector<2x8xf32>
    %45 = math.exp %44 : vector<2x8xf32>
    %cst_14 = arith.constant dense<0.000000e+00> : vector<2xf32>
    %46 = vector.multi_reduction <add>, %45, %cst_14 [1] : vector<2x8xf32> to vector<2xf32>
    %47 = vector.shape_cast %46 : vector<2xf32> to vector<2x1xf32>
    %48 = tpu.reciprocal %47 : vector<2x1xf32> -> vector<2x1xf32>
    %49 = vector.broadcast %48 : vector<2x1xf32> to vector<2x8xf32>
    %50 = arith.mulf %45, %49 : vector<2x8xf32>
    %51 = vector.extract_strided_slice %6 {offsets = [0, 35], sizes = [2, 128], strides = [1, 1]} : vector<2x163xf32> to vector<2x128xf32>
    %c0_15 = arith.constant 0 : index
    %c0_16 = arith.constant 0 : index
    %c0_17 = arith.constant 0 : index
    %52 = vector.load %arg2[%c0_15, %c0_16, %c0_17] : memref<2x8x32xf32, #tpu.memory_space<vmem>>, vector<2x8x32xf32>
    %53 = vector.shape_cast %52 : vector<2x8x32xf32> to vector<16x32xf32>
    %c0_18 = arith.constant 0 : index
    %c0_19 = arith.constant 0 : index
    %54 = vector.load %arg7[%c0_18, %c0_19] : memref<32x128xf32, #tpu.memory_space<vmem>>, vector<32x128xf32>
    %cst_20 = arith.constant dense<0.000000e+00> : vector<16x128xf32>
    %55 = tpu.matmul %53, %54, %cst_20 {dimension_numbers = #tpu.dot_dimension_numbers<[1], [0], [0], [1], [0, 0, 1, 1], [], []>} : vector<16x32xf32>, vector<32x128xf32>, vector<16x128xf32> -> vector<16x128xf32>
    %c0_21 = arith.constant 0 : index
    %c0_22 = arith.constant 0 : index
    %56 = vector.load %arg8[%c0_21, %c0_22] : memref<1x128xf32, #tpu.memory_space<vmem>>, vector<1x128xf32>
    %57 = vector.broadcast %56 : vector<1x128xf32> to vector<16x128xf32>
    %58 = arith.addf %55, %57 : vector<16x128xf32>
    %59 = vector.shape_cast %58 : vector<16x128xf32> to vector<2x8x128xf32>
    %60 = vector.shape_cast %51 : vector<2x128xf32> to vector<2x1x128xf32>
    %61 = vector.broadcast %60 : vector<2x1x128xf32> to vector<2x8x128xf32>
    %62 = arith.mulf %59, %61 : vector<2x8x128xf32>
    %cst_23 = arith.constant dense<0.000000e+00> : vector<2x8xf32>
    %63 = vector.multi_reduction <add>, %62, %cst_23 [2] : vector<2x8x128xf32> to vector<2x8xf32>
    %cst_24 = arith.constant dense<0xFF800000> : vector<2xf32>
    %64 = vector.multi_reduction <maximumf>, %63, %cst_24 [1] : vector<2x8xf32> to vector<2xf32>
    %65 = vector.shape_cast %64 : vector<2xf32> to vector<2x1xf32>
    %66 = vector.broadcast %65 : vector<2x1xf32> to vector<2x8xf32>
    %67 = arith.subf %63, %66 : vector<2x8xf32>
    %68 = math.exp %67 : vector<2x8xf32>
    %cst_25 = arith.constant dense<0.000000e+00> : vector<2xf32>
    %69 = vector.multi_reduction <add>, %68, %cst_25 [1] : vector<2x8xf32> to vector<2xf32>
    %70 = vector.shape_cast %69 : vector<2xf32> to vector<2x1xf32>
    %71 = tpu.reciprocal %70 : vector<2x1xf32> -> vector<2x1xf32>
    %72 = vector.broadcast %71 : vector<2x1xf32> to vector<2x8xf32>
    %73 = arith.mulf %68, %72 : vector<2x8xf32>
    %c0_26 = arith.constant 0 : index
    %c0_27 = arith.constant 0 : index
    %74 = vector.load %arg5[%c0_26, %c0_27] : memref<32x101xf32, #tpu.memory_space<vmem>>, vector<32x101xf32>
    %cst_28 = arith.constant dense<0.000000e+00> : vector<2x101xf32>
    %75 = tpu.matmul %1, %74, %cst_28 {dimension_numbers = #tpu.dot_dimension_numbers<[1], [0], [0], [1], [0, 0, 1, 1], [], []>} : vector<2x32xf32>, vector<32x101xf32>, vector<2x101xf32> -> vector<2x101xf32>
    %c0_29 = arith.constant 0 : index
    %c0_30 = arith.constant 0 : index
    %76 = vector.load %arg6[%c0_29, %c0_30] : memref<1x101xf32, #tpu.memory_space<vmem>>, vector<1x101xf32>
    %77 = vector.broadcast %76 : vector<1x101xf32> to vector<2x101xf32>
    %78 = arith.addf %75, %77 : vector<2x101xf32>
    %79 = vector.extract_strided_slice %78 {offsets = [0, 0], sizes = [2, 100], strides = [1, 1]} : vector<2x101xf32> to vector<2x100xf32>
    %cst_31 = arith.constant dense<0xFF800000> : vector<2xf32>
    %80 = vector.multi_reduction <maximumf>, %79, %cst_31 [1] : vector<2x100xf32> to vector<2xf32>
    %81 = vector.shape_cast %80 : vector<2xf32> to vector<2x1xf32>
    %82 = vector.broadcast %81 : vector<2x1xf32> to vector<2x100xf32>
    %83 = arith.subf %79, %82 : vector<2x100xf32>
    %84 = math.exp %83 : vector<2x100xf32>
    %cst_32 = arith.constant dense<0.000000e+00> : vector<2xf32>
    %85 = vector.multi_reduction <add>, %84, %cst_32 [1] : vector<2x100xf32> to vector<2xf32>
    %86 = vector.shape_cast %85 : vector<2xf32> to vector<2x1xf32>
    %87 = tpu.reciprocal %86 : vector<2x1xf32> -> vector<2x1xf32>
    %88 = vector.broadcast %87 : vector<2x1xf32> to vector<2x100xf32>
    %89 = arith.mulf %84, %88 : vector<2x100xf32>
    %90 = vector.extract_strided_slice %78 {offsets = [0, 100], sizes = [2, 1], strides = [1, 1]} : vector<2x101xf32> to vector<2x1xf32>
    %cst_33 = arith.constant 0.000000e+00 : f32
    %91 = vector.broadcast %cst_33 : f32 to vector<2x1xf32>
    %92 = arith.subf %91, %90 : vector<2x1xf32>
    %93 = math.exp %92 : vector<2x1xf32>
    %cst_34 = arith.constant 1.000000e+00 : f32
    %94 = vector.broadcast %cst_34 : f32 to vector<2x1xf32>
    %95 = arith.addf %94, %93 : vector<2x1xf32>
    %cst_35 = arith.constant 1.000000e+00 : f32
    %96 = vector.broadcast %cst_35 : f32 to vector<2x1xf32>
    %97 = arith.divf %96, %95 : vector<2x1xf32>
    %98 = vector.broadcast %97 : vector<2x1xf32> to vector<2x8xf32>
    %99 = arith.mulf %98, %50 : vector<2x8xf32>
    %cst_36 = arith.constant 1.000000e+00 : f32
    %100 = vector.broadcast %cst_36 : f32 to vector<2x1xf32>
    %101 = arith.subf %100, %97 : vector<2x1xf32>
    %102 = vector.broadcast %101 : vector<2x1xf32> to vector<2x100xf32>
    %103 = arith.mulf %102, %89 : vector<2x100xf32>
    %104 = tpu.concatenate %17, %28, %39, %73, %99, %103 in 1 : vector<2x8xf32>, vector<2x3xf32>, vector<2x16xf32>, vector<2x8xf32>, vector<2x8xf32>, vector<2x100xf32> -> vector<2x143xf32>
    %c0_37 = arith.constant 0 : index
    %c0_38 = arith.constant 0 : index
    %105 = vector.load %arg9[%c0_37, %c0_38] : memref<2x143xf32, #tpu.memory_space<vmem>>, vector<2x143xf32>
    tpu.vector_store %arg9[%c0_37, %c0_38], %104 {strides = array<i32>} : memref<2x143xf32, #tpu.memory_space<vmem>>, vector<2x143xf32>,
    return
  }
}

</mosaic_0001>

<llo_original>
// kernel: tpu_custom_call.1
$region0: #{tpu_custom_call.1}
  #allocation0 [shape = 'u32[]', space=smem, size = 0x4, offset = 0x4, fixed_abs, tag = 'smem constant byte address 0x4 - core index']
  #allocation1 [shape = 'u32[144,128]{1,0:T(1,128)}', space=vmem, size = 0x12000, scoped, tag = 'internal scratch']
  %s0 = inlined_call_operand.hbm [shape: f32[2,32], index: 0, kind: input, shape index: {}]
  %s1 = inlined_call_operand.vmem [shape: f32[2,32], index: 1, kind: input, shape index: {}]
  %s2 = inlined_call_operand.hbm [shape: f32[2,8,32], index: 2, kind: input, shape index: {}]
  %s3 = inlined_call_operand.hbm [shape: f32[32,163], index: 3, kind: input, shape index: {}]
  %s4 = inlined_call_operand.vmem [shape: f32[1,163], index: 4, kind: input, shape index: {}]
  %s5 = inlined_call_operand.hbm [shape: f32[32,101], index: 5, kind: input, shape index: {}]
  %s6 = inlined_call_operand.vmem [shape: f32[1,101], index: 6, kind: input, shape index: {}]
  %s7 = inlined_call_operand.hbm [shape: f32[32,128], index: 7, kind: input, shape index: {}]
  %s8 = inlined_call_operand.vmem [shape: f32[1,128], index: 8, kind: input, shape index: {}]
  %s9 = inlined_call_operand.hbm [shape: f32[2,143], index: 9, kind: output, shape index: {}]
  %s10 = sld [smem:[#allocation0]]
  $region66: #{tpu_custom_call.1} parent=0
    _
  %s12 = ssub.s32 1, %s10
  %s13 = scalar_select 0, %s12, %s10
  $region1: #{tpu_custom_call.1} parent=0
    #allocation2 [shape = 'u8[1024]{0}', space=vmem, size = 0x400, scoped, tag = 'input window, operand 0, single buffered']
    #allocation3 [shape = 's32[1]{0}', space=sflag, size = 0x4, scoped, tag = 'scoped memory for tpu_custom_call.1']
    #allocation4 [shape = 's32[1]{0}', space=sflag, size = 0x4, scoped, tag = 'scoped memory for tpu_custom_call.1']
    #allocation5 [shape = 'u8[8192]{0}', space=vmem, size = 0x2000, scoped, tag = 'input window, operand 2, single buffered']
    #allocation6 [shape = 's32[1]{0}', space=sflag, size = 0x4, scoped, tag = 'scoped memory for tpu_custom_call.1']
    #allocation7 [shape = 'u8[32768]{0}', space=vmem, size = 0x8000, scoped, tag = 'input window, operand 3, single buffered']
    #allocation8 [shape = 'u8[16384]{0}', space=vmem, size = 0x4000, scoped, tag = 'input window, operand 5, single buffered']
    #allocation9 [shape = 's32[1]{0}', space=sflag, size = 0x4, scoped, tag = 'scoped memory for tpu_custom_call.1']
    #allocation10 [shape = 'u8[16384]{0}', space=vmem, size = 0x4000, scoped, tag = 'input window, operand 7, single buffered']
    #allocation11 [shape = 'u8[2048]{0}', space=vmem, size = 0x800, scoped, tag = 'output window, operand 0, single buffered']
    %14 = vsyncpa [#allocation3], 0
    %15 = vsyncpa [#allocation6], 0
    %16 = vsyncpa [#allocation9], 0
    %17 = vsyncpa [#allocation4], 0
    // Predicated region
    $region2: #{tpu_custom_call.1} parent=1 // pred_check
      _
    $region3: #{tpu_custom_call.1} parent=1 // pred_check_branch
      %19 = sbr.rel (0) target = $region5
    $region4: #{tpu_custom_call.1} parent=1 // pred_region
      %s21 = ssub.s32 32, 32
      %22 = vsyncadd [#allocation3], %s21
      %s24 = sshll.u32 [#allocation2], 4
      %s25 = int_to_ptr.vmem [resolvable:$true] %s24
      %27 = dma.hbm_to_vmem [thread:$0]  %s0, 32, %s25, [#allocation3]
    $region5: #{tpu_custom_call.1} parent=1 // pred_fallthru
      _
    // Predicated region
    $region6: #{tpu_custom_call.1} parent=1 // pred_check
      _
    $region7: #{tpu_custom_call.1} parent=1 // pred_check_branch
      %29 = sbr.rel (0) target = $region9
    $region8: #{tpu_custom_call.1} parent=1 // pred_region
      _
    $region9: #{tpu_custom_call.1} parent=1 // pred_fallthru
      _
    // Predicated region
    $region10: #{tpu_custom_call.1} parent=1 // pred_check
      _
    $region11: #{tpu_custom_call.1} parent=1 // pred_check_branch
      %31 = sbr.rel (0) target = $region13
    $region12: #{tpu_custom_call.1} parent=1 // pred_region
      %s33 = ssub.s32 256, 256
      %34 = vsyncadd [#allocation6], %s33
      %s35 = sshll.u32 [#allocation5], 4
      %s36 = int_to_ptr.vmem [resolvable:$true] %s35
      %41 = dma.hbm_to_vmem [thread:$0]  %s2, 256, %s36, [#allocation6], 128, 128, 8
    $region13: #{tpu_custom_call.1} parent=1 // pred_fallthru
      _
    // Predicated region
    $region14: #{tpu_custom_call.1} parent=1 // pred_check
      _
    $region15: #{tpu_custom_call.1} parent=1 // pred_check_branch
      %43 = sbr.rel (0) target = $region17
    $region16: #{tpu_custom_call.1} parent=1 // pred_region
      %s45 = ssub.s32 1024, 1024
      %46 = vsyncadd [#allocation6], %s45
      %s47 = sshll.u32 [#allocation7], 4
      %s48 = int_to_ptr.vmem [resolvable:$true] %s47
      %53 = dma.hbm_to_vmem [thread:$0]  %s3, 1024, %s48, [#allocation6], 256, 256, 16
    $region17: #{tpu_custom_call.1} parent=1 // pred_fallthru
      _
    // Predicated region
    $region18: #{tpu_custom_call.1} parent=1 // pred_check
      _
    $region19: #{tpu_custom_call.1} parent=1 // pred_check_branch
      %55 = sbr.rel (0) target = $region21
    $region20: #{tpu_custom_call.1} parent=1 // pred_region
      _
    $region21: #{tpu_custom_call.1} parent=1 // pred_fallthru
      _
    // Predicated region
    $region22: #{tpu_custom_call.1} parent=1 // pred_check
      _
    $region23: #{tpu_custom_call.1} parent=1 // pred_check_branch
      %57 = sbr.rel (0) target = $region25
    $region24: #{tpu_custom_call.1} parent=1 // pred_region
      %s59 = ssub.s32 512, 512
      %60 = vsyncadd [#allocation9], %s59
      %s61 = sshll.u32 [#allocation8], 4
      %s62 = int_to_ptr.vmem [resolvable:$true] %s61
      %67 = dma.hbm_to_vmem [thread:$0]  %s5, 512, %s62, [#allocation9], 128, 128, 8
    $region25: #{tpu_custom_call.1} parent=1 // pred_fallthru
      _
    // Predicated region
    $region26: #{tpu_custom_call.1} parent=1 // pred_check
      _
    $region27: #{tpu_custom_call.1} parent=1 // pred_check_branch
      %69 = sbr.rel (0) target = $region29
    $region28: #{tpu_custom_call.1} parent=1 // pred_region
      _
    $region29: #{tpu_custom_call.1} parent=1 // pred_fallthru
      _
    // Predicated region
    $region30: #{tpu_custom_call.1} parent=1 // pred_check
      _
    $region31: #{tpu_custom_call.1} parent=1 // pred_check_branch
      %71 = sbr.rel (0) target = $region33
    $region32: #{tpu_custom_call.1} parent=1 // pred_region
      %s73 = ssub.s32 512, 512
      %74 = vsyncadd [#allocation9], %s73
      %s75 = sshll.u32 [#allocation10], 4
      %s76 = int_to_ptr.vmem [resolvable:$true] %s75
      %81 = dma.hbm_to_vmem [thread:$0]  %s7, 512, %s76, [#allocation9], 128, 128, 8
    $region33: #{tpu_custom_call.1} parent=1 // pred_fallthru
      _
    // Predicated region
    $region34: #{tpu_custom_call.1} parent=1 // pred_check
      _
    $region35: #{tpu_custom_call.1} parent=1 // pred_check_branch
      %83 = sbr.rel (0) target = $region37
    $region36: #{tpu_custom_call.1} parent=1 // pred_region
      _
    $region37: #{tpu_custom_call.1} parent=1 // pred_fallthru
      _
    // Predicated region
    $region38: #{tpu_custom_call.1} parent=1 // pred_check
      _
    $region39: #{tpu_custom_call.1} parent=1 // pred_check_branch
      %85 = sbr.rel (0) target = $region41
    $region40: #{tpu_custom_call.1} parent=1 // pred_region
      %86 = dma.done [#allocation3], 32
    $region41: #{tpu_custom_call.1} parent=1 // pred_fallthru
      _
    // Predicated region
    $region42: #{tpu_custom_call.1} parent=1 // pred_check
      _
    $region43: #{tpu_custom_call.1} parent=1 // pred_check_branch
      %88 = sbr.rel (0) target = $region45
    $region44: #{tpu_custom_call.1} parent=1 // pred_region
      %89 = dma.done [#allocation6], 256
    $region45: #{tpu_custom_call.1} parent=1 // pred_fallthru
      _
    // Predicated region
    $region46: #{tpu_custom_call.1} parent=1 // pred_check
      _
    $region47: #{tpu_custom_call.1} parent=1 // pred_check_branch
      %91 = sbr.rel (0) target = $region49
    $region48: #{tpu_custom_call.1} parent=1 // pred_region
      %92 = dma.done [#allocation6], 1024
    $region49: #{tpu_custom_call.1} parent=1 // pred_fallthru
      _
    // Predicated region
    $region50: #{tpu_custom_call.1} parent=1 // pred_check
      _
    $region51: #{tpu_custom_call.1} parent=1 // pred_check_branch
      %94 = sbr.rel (0) target = $region53
    $region52: #{tpu_custom_call.1} parent=1 // pred_region
      %95 = dma.done [#allocation9], 512
    $region53: #{tpu_custom_call.1} parent=1 // pred_fallthru
      _
    // Predicated region
    $region54: #{tpu_custom_call.1} parent=1 // pred_check
      _
    $region55: #{tpu_custom_call.1} parent=1 // pred_check_branch
      %97 = sbr.rel (0) target = $region57
    $region56: #{tpu_custom_call.1} parent=1 // pred_region
      %98 = dma.done [#allocation9], 512
    $region57: #{tpu_custom_call.1} parent=1 // pred_fallthru
      _
    %v99 = vld [vmem:[#allocation2] sm:$0x3]
    %v100 = vld [vmem:[%s1] sm:$0x3]
    %v101 = vld [vmem:[#allocation7] sm:$0xff]
    %v102 = vld [vmem:[#allocation7 + $0x8] sm:$0xff]
    %v103 = vld [vmem:[#allocation7 + $0x10] sm:$0xff]
    %v104 = vld [vmem:[#allocation7 + $0x18] sm:$0xff]
    %v105 = vld [vmem:[#allocation7 + $0x20] sm:$0xff]
    %v106 = vld [vmem:[#allocation7 + $0x28] sm:$0xff]
    %v107 = vld [vmem:[#allocation7 + $0x30] sm:$0xff]
    %v108 = vld [vmem:[#allocation7 + $0x38] sm:$0xff]
    %v109 = vld [vmem:[%s4] sm:$0x3]
    %v111 = vlaneseq
    %v112 = vshrl.u32 %v111, 7
    %v113 = vsub.s32 0, %v112
    %v114 = vrot.slane %v109, %v113
    %v115 = vlaneseq
    %v116 = vshrl.u32 %v115, 7
    %v117 = vsub.s32 1, %v116
    %v118 = vrot.slane %v109, %v117
    %vm121 = vcmask 261120
    %v123 = vsel %vm121, %v99, 0
    %125 = vmatprep.subr.mxu0 %v102
    %126 = vmatpush1.msra.mxu0 %v101
    %127 = vmatprep.subr.mxu0 %v104
    %128 = vmatpush1.msra.mxu0 %v103
    %129 = vmatprep.subr.mxu0 %v106
    %130 = vmatpush1.msra.mxu0 %v105
    %131 = vmatprep.subr.mxu0 %v108
    %132 = vmatpush1.msra.mxu0 %v107
    %133 = vmatprep.subr.mxu0 0.0
    %134 = vmatpush1.msra.mxu0 0.0
    %135 = vmatprep.subr.mxu0 0.0
    %136 = vmatpush1.msra.mxu0 0.0
    %137 = vmatprep.subr.mxu0 0.0
    %138 = vmatpush1.msra.mxu0 0.0
    %139 = vmatprep.subr.mxu0 0.0
    %140 = vmatpush1.msra.mxu0 0.0
    %141 = vmatprep.subr.mxu0 0.0
    %142 = vmatpush1.msra.mxu0 0.0
    %143 = vmatprep.subr.mxu0 0.0
    %144 = vmatpush1.msra.mxu0 0.0
    %145 = vmatprep.subr.mxu0 0.0
    %146 = vmatpush1.msra.mxu0 0.0
    %147 = vmatprep.subr.mxu0 0.0
    %148 = vmatpush1.msra.mxu0 0.0
    %149 = vmatprep.subr.mxu0 0.0
    %150 = vmatpush1.msra.mxu0 0.0
    %151 = vmatprep.subr.mxu0 0.0
    %152 = vmatpush1.msra.mxu0 0.0
    %153 = vmatprep.subr.mxu0 0.0
    %154 = vmatpush1.msra.mxu0 0.0
    %155 = vmatprep.subr.mxu0 0.0
    %156 = vmatpush1.msra.mxu0 0.0
    %157 = vmatprep.subr.mxu0 0.0
    %158 = vmatpush1.msra.mxu0 0.0
    %159 = vmatprep.subr.mxu0 0.0
    %160 = vmatpush1.msra.mxu0 0.0
    %161 = vmatprep.subr.mxu0 0.0
    %162 = vmatpush1.msra.mxu0 0.0
    %163 = vmatprep.subr.mxu0 0.0
    %164 = vmatpush1.msra.mxu0 0.0
    %165 = vmatprep.subr.mxu0 0.0
    %166 = vmatpush1.msra.mxu0 0.0
    %167 = vmatprep.subr.mxu0 0.0
    %168 = vmatpush1.msra.mxu0 0.0
    %169 = vmatprep.subr.mxu0 0.0
    %170 = vmatpush1.msra.mxu0 0.0
    %171 = vmatprep.subr.mxu0 0.0
    %172 = vmatpush1.msra.mxu0 0.0
    %173 = vmatprep.subr.mxu0 0.0
    %174 = vmatpush1.msra.mxu0 0.0
    %175 = vmatprep.subr.mxu0 0.0
    %176 = vmatpush1.msra.mxu0 0.0
    %177 = vmatprep.subr.mxu0 0.0
    %178 = vmatpush1.msra.mxu0 0.0
    %179 = vmatprep.subr.mxu0 0.0
    %180 = vmatpush1.msra.mxu0 0.0
    %181 = vmatprep.subr.mxu0 0.0
    %182 = vmatpush1.msra.mxu0 0.0
    %183 = vmatprep.subr.mxu0 0.0
    %184 = vmatpush1.msra.mxu0 0.0
    %185 = vmatprep.subr.mxu0 0.0
    %186 = vmatpush1.msra.mxu0 0.0
    %187 = vmatprep.subr.mxu0 0.0
    %188 = vmatpush1.msra.mxu0 0.0
    %189 = vmatprep.mubr.f32.mxu0 0.0
    %190 = vmatmul.mubr.f32.gmra.mrb[0].mxu0 %v123
    %v191 = vpop.f32.mrb[0].mxu0
    %v192 = vadd.f32 %v114, %v191
    %v193 = vpop.f32.mrb[0].mxu0
    %v194 = vadd.f32 %v118, %v193
    %195 = vdwg.mxu0
    %vm196 = vcmask 58368
    %v197 = vsel %vm196, %v192, -inf
    %198 = vmax.xlane.f32.xlu0 %v197
    %v199 = vpop.xlane.xlu0 %198
    %v200 = vsub.f32 %v192, %v199
    %v201 = vmul.f32 %v200, 1.442695
    %v202 = vpow.pop %v201
    %v203 = vsel %vm196, %v202, 0.0
    %204 = vadd.xlane.f32.xlu0 %v203
    %v205 = vpop.xlane.xlu0 %204
    %v206 = vrcp.pop %v205
    %v207 = vmul.f32 %v202, %v206
    %vm208 = vcmask 83008
    %v209 = vsel %vm208, %v192, -inf
    %210 = vmax.xlane.f32.xlu0 %v209
    %v211 = vpop.xlane.xlu0 %210
    %v212 = vsub.f32 %v192, %v211
    %v213 = vmul.f32 %v212, 1.442695
    %v214 = vpow.pop %v213
    %216 = vrot.lane.b32.xlu0 %v214, 120
    %v217 = vpop.permute.xlu0 %216
    %vm219 = vcmask 17408
    %v220 = vsel %vm219, %v217, 0.0
    %221 = vadd.xlane.f32.xlu0 %v220
    %v222 = vpop.xlane.xlu0 %221
    %v223 = vrcp.pop %v222
    %v224 = vmul.f32 %v214, %v223
    %vm225 = vcmask 214104
    %v226 = vsel %vm225, %v192, -inf
    %227 = vmax.xlane.f32.xlu0 %v226
    %v228 = vpop.xlane.xlu0 %227
    %v229 = vsub.f32 %v192, %v228
    %v230 = vmul.f32 %v229, 1.442695
    %v231 = vpow.pop %v230
    %233 = vrot.lane.b32.xlu0 %v231, 117
    %v234 = vpop.permute.xlu0 %233
    %vm236 = vcmask 123904
    %v237 = vsel %vm236, %v234, 0.0
    %238 = vadd.xlane.f32.xlu0 %v237
    %v239 = vpop.xlane.xlu0 %238
    %v240 = vrcp.pop %v239
    %v241 = vmul.f32 %v231, %v240
    %vm242 = vcmask 279768
    %v243 = vsel %vm242, %v192, -inf
    %244 = vmax.xlane.f32.xlu0 %v243
    %v245 = vpop.xlane.xlu0 %244
    %v246 = vsub.f32 %v192, %v245
    %v247 = vmul.f32 %v246, 1.442695
    %v248 = vpow.pop %v247
    %250 = vrot.lane.b32.xlu0 %v248, 101
    %v251 = vpop.permute.xlu0 %250
    %v253 = vsel %vm196, %v251, 0.0
    %254 = vadd.xlane.f32.xlu0 %v253
    %v255 = vpop.xlane.xlu0 %254
    %v256 = vrcp.pop %v255
    %v257 = vmul.f32 %v248, %v256
    %v258 = vld [vmem:[#allocation5] sm:$0xff]
    %v259 = vld [vmem:[#allocation5 + $0x8] sm:$0xff]
    %v260 = vld [vmem:[#allocation10] sm:$0xff]
    %v261 = vld [vmem:[#allocation10 + $0x8] sm:$0xff]
    %v262 = vld [vmem:[#allocation10 + $0x10] sm:$0xff]
    %v263 = vld [vmem:[#allocation10 + $0x18] sm:$0xff]
    %v264 = vld [vmem:[%s8] sm:$0x1]
    %v266 = vlaneseq
    %v267 = vshrl.u32 %v266, 7
    %v268 = vsub.s32 0, %v267
    %v269 = vrot.slane %v264, %v268
    %v272 = vsel %vm121, %v258, 0
    %v275 = vsel %vm121, %v259, 0
    %277 = vmatprep.subr.mxu0 0.0
    %278 = vmatpush1.msra.mxu0 %v260
    %279 = vmatprep.subr.mxu0 0.0
    %280 = vmatpush1.msra.mxu0 %v261
    %281 = vmatprep.subr.mxu0 0.0
    %282 = vmatpush1.msra.mxu0 %v262
    %283 = vmatprep.subr.mxu0 0.0
    %284 = vmatpush1.msra.mxu0 %v263
    %285 = vmatprep.subr.mxu0 0.0
    %286 = vmatpush1.msra.mxu0 0.0
    %287 = vmatprep.subr.mxu0 0.0
    %288 = vmatpush1.msra.mxu0 0.0
    %289 = vmatprep.subr.mxu0 0.0
    %290 = vmatpush1.msra.mxu0 0.0
    %291 = vmatprep.subr.mxu0 0.0
    %292 = vmatpush1.msra.mxu0 0.0
    %293 = vmatprep.subr.mxu0 0.0
    %294 = vmatpush1.msra.mxu0 0.0
    %295 = vmatprep.subr.mxu0 0.0
    %296 = vmatpush1.msra.mxu0 0.0
    %297 = vmatprep.subr.mxu0 0.0
    %298 = vmatpush1.msra.mxu0 0.0
    %299 = vmatprep.subr.mxu0 0.0
    %300 = vmatpush1.msra.mxu0 0.0
    %301 = vmatprep.subr.mxu0 0.0
    %302 = vmatpush1.msra.mxu0 0.0
    %303 = vmatprep.subr.mxu0 0.0
    %304 = vmatpush1.msra.mxu0 0.0
    %305 = vmatprep.subr.mxu0 0.0
    %306 = vmatpush1.msra.mxu0 0.0
    %307 = vmatprep.subr.mxu0 0.0
    %308 = vmatpush1.msra.mxu0 0.0
    %309 = vmatprep.subr.mxu0 0.0
    %310 = vmatpush1.msra.mxu0 0.0
    %311 = vmatprep.subr.mxu0 0.0
    %312 = vmatpush1.msra.mxu0 0.0
    %313 = vmatprep.subr.mxu0 0.0
    %314 = vmatpush1.msra.mxu0 0.0
    %315 = vmatprep.subr.mxu0 0.0
    %316 = vmatpush1.msra.mxu0 0.0
    %317 = vmatprep.subr.mxu0 0.0
    %318 = vmatpush1.msra.mxu0 0.0
    %319 = vmatprep.subr.mxu0 0.0
    %320 = vmatpush1.msra.mxu0 0.0
    %321 = vmatprep.subr.mxu0 0.0
    %322 = vmatpush1.msra.mxu0 0.0
    %323 = vmatprep.subr.mxu0 0.0
    %324 = vmatpush1.msra.mxu0 0.0
    %325 = vmatprep.subr.mxu0 0.0
    %326 = vmatpush1.msra.mxu0 0.0
    %327 = vmatprep.subr.mxu0 0.0
    %328 = vmatpush1.msra.mxu0 0.0
    %329 = vmatprep.subr.mxu0 0.0
    %330 = vmatpush1.msra.mxu0 0.0
    %331 = vmatprep.subr.mxu0 0.0
    %332 = vmatpush1.msra.mxu0 0.0
    %333 = vmatprep.subr.mxu0 0.0
    %334 = vmatpush1.msra.mxu0 0.0
    %335 = vmatprep.subr.mxu0 0.0
    %336 = vmatpush1.msra.mxu0 0.0
    %337 = vmatprep.subr.mxu0 0.0
    %338 = vmatpush1.msra.mxu0 0.0
    %339 = vmatprep.subr.mxu0 0.0
    %340 = vmatpush1.msra.mxu0 0.0
    %341 = vmatprep.mubr.f32.mxu0 0.0
    %342 = vmatmul.mubr.f32.gmra.mrb[0].mxu0 %v272
    %v343 = vpop.f32.mrb[0].mxu0
    %v344 = vadd.f32 %v269, %v343
    %v345 = vpop.f32.mrb[0].mxu0
    %346 = vmatprep.mubr.f32.mxu0 0.0
    %347 = vmatmul.mubr.f32.gmra.mrb[0].mxu0 %v275
    %v348 = vpop.f32.mrb[0].mxu0
    %v349 = vadd.f32 %v269, %v348
    %v350 = vpop.f32.mrb[0].mxu0
    %351 = vdwg.mxu0
    %v354 = vcombine.low %v192, %v194
    %v356 = vunpack.c.l.s4 1966171168
    %v357 = vunpack.c.0.s8 %v356
    %v358 = vlaneseq
    %v359 = vshrl.u32 %v358, 7
    %v360 = vsub.s32 %v357, %v359
    %v361 = vrot.slane %v354, %v360
    %v362 = vcombine.high %v361, %v361
    %v364 = vunpack.c.l.s4 1966171168
    %v365 = vunpack.c.0.s8 %v364
    %v366 = vlaneseq
    %v367 = vshrl.u32 %v366, 7
    %v368 = vsub.s32 %v365, %v367
    %v369 = vrot.slane %v361, %v368
    %v371 = vunpack.c.l.s4 1966171168
    %v372 = vunpack.c.0.s8 %v371
    %v373 = vlaneseq
    %v374 = vshrl.u32 %v373, 7
    %v375 = vsub.s32 %v372, %v374
    %v376 = vrot.slane %v362, %v375
    %v377 = vlaneseq
    %v378 = vshrl.u32 %v377, 7
    %v379 = vsub.s32 0, %v378
    %v380 = vrot.slane %v369, %v379
    %v381 = vlaneseq
    %v382 = vshrl.u32 %v381, 7
    %v383 = vsub.s32 1, %v382
    %v384 = vrot.slane %v369, %v383
    %v385 = vlaneseq
    %v386 = vshrl.u32 %v385, 7
    %v387 = vsub.s32 0, %v386
    %v388 = vrot.slane %v376, %v387
    %v389 = vlaneseq
    %v390 = vshrl.u32 %v389, 7
    %v391 = vsub.s32 1, %v390
    %v392 = vrot.slane %v376, %v391
    %393 = vrot.lane.b32.xlu0 %v380, 93
    %v394 = vpop.permute.xlu0 %393
    %395 = vrot.lane.b32.xlu0 %v384, 93
    %v396 = vpop.permute.xlu0 %395
    %397 = vrot.lane.b32.xlu0 %v388, 93
    %v398 = vpop.permute.xlu0 %397
    %399 = vrot.lane.b32.xlu0 %v392, 93
    %v400 = vpop.permute.xlu0 %399
    %vm401 = vcmask 760832
    %v402 = vsel %vm401, %v394, %v396
    %v403 = vsel %vm401, %v398, %v400
    %v406 = vmul.f32 %v344, %v402
    %v407 = vmul.f32 %v349, %v403
    %408 = vadd.xlane.f32.xlu0 %v406
    %v409 = vpop.xlane.xlu0 %408
    %410 = vadd.xlane.f32.xlu0 %v407
    %v411 = vpop.xlane.xlu0 %410
    %v414 = vlaneseq
    %v415 = vand.u32 %v414, 127
    %v416 = vlaneseq
    %v417 = vshrl.u32 %v416, 7
    %v418 = vsub.s32 %v415, %v417
    %v419 = vrot.slane %v409, %v418
    %v420 = vlaneseq
    %v421 = vshrl.u32 %v420, 7
    %v422 = vsub.s32 %v415, %v421
    %v423 = vrot.slane %v411, %v422
    %vm424 = vcmask 1041409
    %v425 = vsel %vm424, %v423, %v419
    %v427 = vsel %vm196, %v425, -inf
    %428 = vmax.xlane.f32.xlu0 %v427
    %v429 = vpop.xlane.xlu0 %428
    %v431 = vlaneseq
    %v432 = vshrl.u32 %v431, 7
    %v433 = vsub.s32 0, %v432
    %v434 = vrot.slane %v429, %v433
    %v435 = vlaneseq
    %v436 = vshrl.u32 %v435, 7
    %v437 = vsub.s32 1, %v436
    %v438 = vrot.slane %v429, %v437
    %v441 = vsub.f32 %v409, %v434
    %v442 = vsub.f32 %v411, %v438
    %v443 = vmul.f32 %v441, 1.442695
    %v444 = vpow.pop %v443
    %v445 = vmul.f32 %v442, 1.442695
    %v446 = vpow.pop %v445
    %449 = vset.pattern.permute.xlu0 0
    %450 = vperm.xlu0 %449, %v444
    %v451 = vpop.permute.xlu0 %450
    %452 = vset.pattern.permute.xlu0 0
    %453 = vperm.xlu0 %452, %v446
    %v454 = vpop.permute.xlu0 %453
    %v455 = vlaneseq
    %v456 = vshrl.u32 %v455, 7
    %v457 = vsub.s32 %v415, %v456
    %v458 = vrot.slane %v451, %v457
    %v459 = vlaneseq
    %v460 = vshrl.u32 %v459, 7
    %v461 = vsub.s32 %v415, %v460
    %v462 = vrot.slane %v454, %v461
    %v463 = vsel %vm424, %v462, %v458
    %v465 = vsel %vm196, %v463, 0.0
    %466 = vadd.xlane.f32.xlu0 %v465
    %v467 = vpop.xlane.xlu0 %466
    %v468 = vrcp.pop %v467
    %v470 = vlaneseq
    %v471 = vshrl.u32 %v470, 7
    %v472 = vsub.s32 0, %v471
    %v473 = vrot.slane %v468, %v472
    %v474 = vlaneseq
    %v475 = vshrl.u32 %v474, 7
    %v476 = vsub.s32 1, %v475
    %v477 = vrot.slane %v468, %v476
    %v480 = vmul.f32 %v444, %v473
    %v481 = vmul.f32 %v446, %v477
    %v482 = vld [vmem:[#allocation8] sm:$0xff]
    %v483 = vld [vmem:[#allocation8 + $0x8] sm:$0xff]
    %v484 = vld [vmem:[#allocation8 + $0x10] sm:$0xff]
    %v485 = vld [vmem:[#allocation8 + $0x18] sm:$0xff]
    %v486 = vld [vmem:[%s6] sm:$0x1]
    %v488 = vlaneseq
    %v489 = vshrl.u32 %v488, 7
    %v490 = vsub.s32 0, %v489
    %v491 = vrot.slane %v486, %v490
    %v494 = vsel %vm121, %v100, 0
    %496 = vmatprep.subr.mxu0 0.0
    %497 = vmatpush1.msra.mxu0 %v482
    %498 = vmatprep.subr.mxu0 0.0
    %499 = vmatpush1.msra.mxu0 %v483
    %500 = vmatprep.subr.mxu0 0.0
    %501 = vmatpush1.msra.mxu0 %v484
    %502 = vmatprep.subr.mxu0 0.0
    %503 = vmatpush1.msra.mxu0 %v485
    %504 = vmatprep.subr.mxu0 0.0
    %505 = vmatpush1.msra.mxu0 0.0
    %506 = vmatprep.subr.mxu0 0.0
    %507 = vmatpush1.msra.mxu0 0.0
    %508 = vmatprep.subr.mxu0 0.0
    %509 = vmatpush1.msra.mxu0 0.0
    %510 = vmatprep.subr.mxu0 0.0
    %511 = vmatpush1.msra.mxu0 0.0
    %512 = vmatprep.subr.mxu0 0.0
    %513 = vmatpush1.msra.mxu0 0.0
    %514 = vmatprep.subr.mxu0 0.0
    %515 = vmatpush1.msra.mxu0 0.0
    %516 = vmatprep.subr.mxu0 0.0
    %517 = vmatpush1.msra.mxu0 0.0
    %518 = vmatprep.subr.mxu0 0.0
    %519 = vmatpush1.msra.mxu0 0.0
    %520 = vmatprep.subr.mxu0 0.0
    %521 = vmatpush1.msra.mxu0 0.0
    %522 = vmatprep.subr.mxu0 0.0
    %523 = vmatpush1.msra.mxu0 0.0
    %524 = vmatprep.subr.mxu0 0.0
    %525 = vmatpush1.msra.mxu0 0.0
    %526 = vmatprep.subr.mxu0 0.0
    %527 = vmatpush1.msra.mxu0 0.0
    %528 = vmatprep.subr.mxu0 0.0
    %529 = vmatpush1.msra.mxu0 0.0
    %530 = vmatprep.subr.mxu0 0.0
    %531 = vmatpush1.msra.mxu0 0.0
    %532 = vmatprep.subr.mxu0 0.0
    %533 = vmatpush1.msra.mxu0 0.0
    %534 = vmatprep.subr.mxu0 0.0
    %535 = vmatpush1.msra.mxu0 0.0
    %536 = vmatprep.subr.mxu0 0.0
    %537 = vmatpush1.msra.mxu0 0.0
    %538 = vmatprep.subr.mxu0 0.0
    %539 = vmatpush1.msra.mxu0 0.0
    %540 = vmatprep.subr.mxu0 0.0
    %541 = vmatpush1.msra.mxu0 0.0
    %542 = vmatprep.subr.mxu0 0.0
    %543 = vmatpush1.msra.mxu0 0.0
    %544 = vmatprep.subr.mxu0 0.0
    %545 = vmatpush1.msra.mxu0 0.0
    %546 = vmatprep.subr.mxu0 0.0
    %547 = vmatpush1.msra.mxu0 0.0
    %548 = vmatprep.subr.mxu0 0.0
    %549 = vmatpush1.msra.mxu0 0.0
    %550 = vmatprep.subr.mxu0 0.0
    %551 = vmatpush1.msra.mxu0 0.0
    %552 = vmatprep.subr.mxu0 0.0
    %553 = vmatpush1.msra.mxu0 0.0
    %554 = vmatprep.subr.mxu0 0.0
    %555 = vmatpush1.msra.mxu0 0.0
    %556 = vmatprep.subr.mxu0 0.0
    %557 = vmatpush1.msra.mxu0 0.0
    %558 = vmatprep.subr.mxu0 0.0
    %559 = vmatpush1.msra.mxu0 0.0
    %560 = vmatprep.mubr.f32.mxu0 0.0
    %561 = vmatmul.mubr.f32.gmra.mrb[0].mxu0 %v494
    %v562 = vpop.f32.mrb[0].mxu0
    %v563 = vadd.f32 %v491, %v562
    %v564 = vpop.f32.mrb[0].mxu0
    %565 = vdwg.mxu0
    %vm566 = vcmask 812032
    %v567 = vsel %vm566, %v563, -inf
    %568 = vmax.xlane.f32.xlu0 %v567
    %v569 = vpop.xlane.xlu0 %568
    %v570 = vsub.f32 %v563, %v569
    %v571 = vmul.f32 %v570, 1.442695
    %v572 = vpow.pop %v571
    %v573 = vsel %vm566, %v572, 0.0
    %574 = vadd.xlane.f32.xlu0 %v573
    %v575 = vpop.xlane.xlu0 %574
    %v576 = vrcp.pop %v575
    %v577 = vmul.f32 %v572, %v576
    %v578 = vsub.f32 0.0, %v563
    %v579 = vmul.f32 %v578, 1.442695
    %v580 = vpow.pop %v579
    %v581 = vadd.f32 %v580, 1.0
    %v582 = vrcp.pop %v581
    %v583 = vmul.f32 1.0, %v582
    %585 = vset.pattern.permute.xlu0 100
    %586 = vperm.xlu0 %585, %v583
    %v587 = vpop.permute.xlu0 %586
    %v589 = vmul.f32 %v587, %v257
    %v590 = vsub.f32 1.0, %v583
    %592 = vset.pattern.permute.xlu0 100
    %593 = vperm.xlu0 %592, %v590
    %v594 = vpop.permute.xlu0 %593
    %v596 = vmul.f32 %v594, %v577
    %599 = vset.pattern.permute.xlu0 0
    %600 = vperm.xlu0 %599, %v480
    %v601 = vpop.permute.xlu0 %600
    %602 = vset.pattern.permute.xlu0 0
    %603 = vperm.xlu0 %602, %v481
    %v604 = vpop.permute.xlu0 %603
    %v605 = vadd.s32 %v415, 4294967269
    %v606 = vlaneseq
    %v607 = vshrl.u32 %v606, 7
    %v608 = vsub.s32 %v605, %v607
    %v609 = vrot.slane %v601, %v608
    %v610 = vlaneseq
    %v611 = vshrl.u32 %v610, 7
    %v612 = vsub.s32 %v605, %v611
    %v613 = vrot.slane %v604, %v612
    %v614 = vsel %vm424, %v613, %v609
    %617 = vrot.lane.b32.xlu0 %v589, 8
    %v618 = vpop.permute.xlu0 %617
    %621 = vrot.lane.b32.xlu0 %v596, 43
    %v622 = vpop.permute.xlu0 %621
    %vm624 = vcmask 64512
    %v625 = vsel %vm624, %v207, %v224
    %vm626 = vcmask 89088
    %v627 = vsel %vm626, %v625, %v241
    %vm628 = vcmask 220160
    %v629 = vsel %vm628, %v627, %v614
    %vm630 = vcmask 285696
    %v631 = vsel %vm630, %v629, %v618
    %vm632 = vcmask 351232
    %v633 = vsel %vm632, %v631, %v622
    %v635 = vcombine.low %v633, %v622
    %v637 = vunpack.c.l.s4 1983009808
    %v638 = vunpack.c.0.s8 %v637
    %v639 = vlaneseq
    %v640 = vshrl.u32 %v639, 7
    %v641 = vsub.s32 %v638, %v640
    %v642 = vrot.slane %v635, %v641
    %vm644 = vcmask 1041408
    %vm645 = vcmask 117762
    %vm646 = vmor %vm645, %vm644
    %647 = vst.msk [vmem:[#allocation11] sm:$0xf] %vm646, %v642
    // Predicated region
    $region58: #{tpu_custom_call.1} parent=1 // pred_check
      _
    $region59: #{tpu_custom_call.1} parent=1 // pred_check_branch
      %649 = sbr.rel (0) target = $region61
    $region60: #{tpu_custom_call.1} parent=1 // pred_region
      %s651 = ssub.s32 64, 64
      %652 = vsyncadd [#allocation4], %s651
      %s654 = sshll.u32 [#allocation11], 4
      %s655 = int_to_ptr.vmem [resolvable:$true] %s654
      %657 = dma.vmem_to_hbm [thread:$0]  %s655, 64, %s9, [#allocation4]
    $region61: #{tpu_custom_call.1} parent=1 // pred_fallthru
      _
    // Predicated region
    $region62: #{tpu_custom_call.1} parent=1 // pred_check
      _
    $region63: #{tpu_custom_call.1} parent=1 // pred_check_branch
      %659 = sbr.rel (0) target = $region65
    $region64: #{tpu_custom_call.1} parent=1 // pred_region
      %660 = dma.done [#allocation4], 64
    $region65: #{tpu_custom_call.1} parent=1 // pred_fallthru
      _
    %661 = vsyncpa [#allocation3], 1
    %662 = vsyncpa [#allocation6], 1
    %663 = vsyncpa [#allocation9], 1
    %664 = vsyncpa [#allocation4], 1

</llo_original>
